<compile_context>
chip_gen: v7x
topology: tpu7x:2x2x1
jax: 0.10.0
libtpu: 0.0.40
codegen_flags: <defaults>
</compile_context>

<pallas_src>
import jax
import jax.numpy as jnp
from jax import lax
from jax.experimental import pallas as pl
from jax.experimental.pallas import tpu as pltpu

# ----------------------------- sizes ---------------------------------------
B = 4    # batch
P = 16   # profile feature dim
S = 8    # padded sequence length
H = 32   # hidden dim of the MLPs
E = 32   # embedding dim (profile2vec output)
D = 32   # state dim (staterep output)

B_PAD = 8                    # batch rows padded to a sublane multiple
ACT_ROWS = B_PAD + B * S     # 40 rows in the activation slab
SLAB_ROWS = 56               # weight/bias/length slab rows (multiple of 8)
OUT_LANES = 128              # lane-dense packed output width

# slab layout (static row/col offsets)
_W1_R0, _W1_R1 = 0, P            # rows  0:16, cols 0:2H      -> [p2v_w1 | sr_w1]
_W2_R0, _W2_R1 = P, P + H        # rows 16:48, cols 0:2E      -> [p2v_w2 | sr_w2]
                                 # rows 16:48, cols 2E:2E+D   -> sr_wo
_B1_ROW = P + H                  # row 48,     cols 0:2H      -> [p2v_b1 | sr_b1]
_B2_ROW = P + H + 1              # row 49,     cols 0:2E      -> [p2v_b2 | sr_b2]
                                 # row 49,     cols 2E:2E+D   -> sr_bo
_LEN_R0 = P + H + 2              # rows 50:50+B, col 0        -> raw lens (f32)


# ----------------------------- fused kernel ---------------------------------
def _user_agent_kernel(act_ref, slab_ref, out_ref):
    # Static slab views (the whole slab arrived in ONE DMA).
    w1b = slab_ref[_W1_R0:_W1_R1, 0:2 * H]                 # [P, 2H]
    w2b = slab_ref[_W2_R0:_W2_R1, 0:2 * E]                 # [H, 2E]
    wo = slab_ref[_W2_R0:_W2_R1, 2 * E:2 * E + D]          # [H, D]
    b1b = slab_ref[_B1_ROW:_B1_ROW + 1, 0:2 * H]           # [1, 2H]
    b2b = slab_ref[_B2_ROW:_B2_ROW + 1, 0:2 * E]           # [1, 2E]
    bo = slab_ref[_B2_ROW:_B2_ROW + 1, 2 * E:2 * E + D]    # [1, D]
    lens_col = slab_ref[_LEN_R0:_LEN_R0 + B, 0:1]          # [B, 1] raw lengths

    # ---- layer 1, both branches in ONE MXU pass: [40,P] @ [P,2H] ----
    xx = act_ref[...]
    h_all = jnp.maximum(
        jnp.dot(xx, w1b, preferred_element_type=jnp.float32) + b1b, 0.0)
    h_p2v = h_all[0:B, 0:H]            # relu(x @ p2v_w1 + p2v_b1)   [B, H]
    hs = h_all[B_PAD:, H:2 * H]        # relu(seq @ sr_w1 + sr_b1)   [B*S, H]

    # ---- binary length mask (no int divide, no per-batch select loop) ----
    col = lax.broadcasted_iota(jnp.int32, (B, B * S), 1)
    rowb = lax.broadcasted_iota(jnp.int32, (B, B * S), 0)
    t = (col - rowb * S).astype(jnp.float32)
    lens_mask = jnp.minimum(lens_col, float(S))            # mask uses RAW len (<=S)
    pool = jnp.where((t >= 0.0) & (t < lens_mask), 1.0, 0.0)   # [B, B*S]

    # ---- masked SUM pool (one MXU pass), mean via EUP reciprocal ----
    sum_h = jnp.dot(pool, hs, preferred_element_type=jnp.float32)    # [B, H]
    recip = pl.reciprocal(jnp.maximum(lens_col, 1.0), approx=True)   # [B, 1]
    mean_h = sum_h * recip

    # ---- layer 2, both branches in ONE MXU pass: [2B,H] @ [H,2E] ----
    x2 = jnp.concatenate([h_p2v, mean_h], axis=0)                    # [2B, H]
    y2 = jnp.dot(x2, w2b, preferred_element_type=jnp.float32)        # [2B, 2E]
    emb = y2[0:B, 0:E] + b2b[:, 0:E]                                 # [B, E]
    bias_scale = jnp.minimum(lens_col, 1.0)        # 0 when len==0 (matches ref)
    pooled = y2[B:2 * B, E:2 * E] + bias_scale * b2b[:, E:2 * E]     # [B, E]

    # ---- staterep output layer ----
    state = jnp.tanh(
        jnp.dot(pooled, wo, preferred_element_type=jnp.float32) + bo)  # [B, D]

    # ---- ONE lane-dense [B, 128] store; wrapper slices (emb, state) ----
    pad = jnp.zeros((B, OUT_LANES - E - D), jnp.float32)
    out_ref[...] = jnp.concatenate([emb, state, pad], axis=-1)


# ----------------------------- wrapper ---------------------------------------
@jax.jit
def user_agent_forward(a_profiles, a_bseq_profiless, a_bseq_lenss, params):
    """UserAgent.forward: returns (a_embeddings, a_state)."""
    bsz, s_len, p_dim = a_bseq_profiless.shape
    seq_flat = a_bseq_profiless.reshape(bsz * s_len, p_dim)

    # Activation slab [B_PAD + B*S, P]: profiles in rows 0:B, seq in rows B_PAD:.
    act = jnp.zeros((ACT_ROWS, P), jnp.float32)
    act = act.at[0:B, :].set(a_profiles)
    act = act.at[B_PAD:, :].set(seq_flat)

    # Weight / bias / length slab [56, 128] (single lane-dense input DMA).
    w1, b1, w2, b2 = params['p2v']
    sw1, sb1, sw2, sb2, swo, sbo = params['srep']
    slab = jnp.zeros((SLAB_ROWS, 128), jnp.float32)
    slab = slab.at[_W1_R0:_W1_R1, 0:2 * H].set(jnp.concatenate([w1, sw1], axis=1))
    slab = slab.at[_W2_R0:_W2_R1, 0:2 * E].set(jnp.concatenate([w2, sw2], axis=1))
    slab = slab.at[_W2_R0:_W2_R1, 2 * E:2 * E + D].set(swo)
    slab = slab.at[_B1_ROW, 0:2 * H].set(jnp.concatenate([b1, sb1], axis=1)[0])
    slab = slab.at[_B2_ROW, 0:2 * E].set(jnp.concatenate([b2, sb2], axis=1)[0])
    slab = slab.at[_B2_ROW, 2 * E:2 * E + D].set(sbo[0])
    slab = slab.at[_LEN_R0:_LEN_R0 + B, 0].set(a_bseq_lenss.astype(jnp.float32))

    out = pl.pallas_call(
        _user_agent_kernel,
        out_shape=jax.ShapeDtypeStruct((B, OUT_LANES), jnp.float32),
        in_specs=[pl.BlockSpec(memory_space=pltpu.MemorySpace.VMEM),
                  pl.BlockSpec(memory_space=pltpu.MemorySpace.VMEM)],
        out_specs=pl.BlockSpec(memory_space=pltpu.MemorySpace.VMEM),
    )(act, slab)

    a_embeddings = out[:, :E]
    a_state = out[:, E:E + D]
    return a_embeddings, a_state


# ----------------------------- params / reference ----------------------------
def init_params(key):
    ks = jax.random.split(key, 8)
    scale = 0.1
    p2v = (scale * jax.random.normal(ks[0], (P, H), jnp.float32),
           jnp.zeros((1, H), jnp.float32),
           scale * jax.random.normal(ks[1], (H, E), jnp.float32),
           jnp.zeros((1, E), jnp.float32))
    srep = (scale * jax.random.normal(ks[2], (P, H), jnp.float32),
            jnp.zeros((1, H), jnp.float32),
            scale * jax.random.normal(ks[3], (H, E), jnp.float32),
            jnp.zeros((1, E), jnp.float32),
            scale * jax.random.normal(ks[4], (E, D), jnp.float32),
            jnp.zeros((1, D), jnp.float32))
    return {'p2v': p2v, 'srep': srep}


def _reference(a_profiles, a_bseq, a_lens, params):
    w1, b1, w2, b2 = params['p2v']
    emb = jnp.maximum(a_profiles @ w1 + b1, 0.0) @ w2 + b2
    sw1, sb1, sw2, sb2, swo, sbo = params['srep']
    hs = jnp.maximum(jnp.einsum('bsp,ph->bsh', a_bseq, sw1) + sb1, 0.0)
    es = jnp.einsum('bsh,he->bse', hs, sw2) + sb2
    t = jnp.arange(a_bseq.shape[1])[None, :, None]
    mask = (t < a_lens[:, None, None]).astype(jnp.float32)
    pooled = (es * mask).sum(1) / jnp.maximum(a_lens, 1).astype(jnp.float32)[:, None]
    state = jnp.tanh(pooled @ swo + sbo)
    return emb, state


# ----------------------------- main ------------------------------------------
if __name__ == "__main__":
    key = jax.random.PRNGKey(0)
    k_in, k_seq, k_par = jax.random.split(key, 3)

    params = init_params(k_par)
    a_profiles = jax.random.normal(k_in, (B, P), jnp.float32)
    a_bseq_profiless = jax.random.normal(k_seq, (B, S, P), jnp.float32)
    a_bseq_lenss = jnp.array([S, 5, 3, 1], dtype=jnp.int32)

    a_embeddings, a_state = user_agent_forward(
        a_profiles, a_bseq_profiless, a_bseq_lenss, params)
    jax.block_until_ready((a_embeddings, a_state))

    assert a_embeddings.shape == (B, E)
    assert a_state.shape == (B, D)
    assert bool(jnp.all(jnp.isfinite(a_embeddings)))
    assert bool(jnp.all(jnp.isfinite(a_state)))

    ref_emb, ref_state = _reference(a_profiles, a_bseq_profiless,
                                    a_bseq_lenss, params)
    assert bool(jnp.allclose(a_embeddings, ref_emb, rtol=1e-2, atol=1e-2))
    assert bool(jnp.allclose(a_state, ref_state, rtol=1e-2, atol=1e-2))

    print("KERNEL_OK")
</pallas_src>

<mosaic_0001>
module attributes {stable_mosaic.version = 11 : i64} {
  func.func @_user_agent_kernel(%arg0: memref<40x16xf32, #tpu.memory_space<vmem>>, %arg1: memref<56x128xf32, #tpu.memory_space<vmem>>, %arg2: memref<4x128xf32, #tpu.memory_space<vmem>>) attributes {dimension_semantics = [], scalar_prefetch = 0 : i64, scratch_operands = 0 : i64, tpu.core_type = #tpu.core_type<tc>} {
    %c0 = arith.constant 0 : index
    %c0_0 = arith.constant 0 : index
    %0 = vector.load %arg1[%c0, %c0_0] : memref<56x128xf32, #tpu.memory_space<vmem>>, vector<16x64xf32>
    %c16 = arith.constant 16 : index
    %c0_1 = arith.constant 0 : index
    %1 = vector.load %arg1[%c16, %c0_1] : memref<56x128xf32, #tpu.memory_space<vmem>>, vector<32x64xf32>
    %c16_2 = arith.constant 16 : index
    %c64 = arith.constant 64 : index
    %2 = vector.load %arg1[%c16_2, %c64] : memref<56x128xf32, #tpu.memory_space<vmem>>, vector<32x32xf32>
    %c48 = arith.constant 48 : index
    %c0_3 = arith.constant 0 : index
    %3 = vector.load %arg1[%c48, %c0_3] : memref<56x128xf32, #tpu.memory_space<vmem>>, vector<1x64xf32>
    %c49 = arith.constant 49 : index
    %c0_4 = arith.constant 0 : index
    %4 = vector.load %arg1[%c49, %c0_4] : memref<56x128xf32, #tpu.memory_space<vmem>>, vector<1x64xf32>
    %c49_5 = arith.constant 49 : index
    %c64_6 = arith.constant 64 : index
    %5 = vector.load %arg1[%c49_5, %c64_6] : memref<56x128xf32, #tpu.memory_space<vmem>>, vector<1x32xf32>
    %c50 = arith.constant 50 : index
    %c0_7 = arith.constant 0 : index
    %6 = vector.load %arg1[%c50, %c0_7] : memref<56x128xf32, #tpu.memory_space<vmem>>, vector<4x1xf32>
    %c0_8 = arith.constant 0 : index
    %c0_9 = arith.constant 0 : index
    %7 = vector.load %arg0[%c0_8, %c0_9] : memref<40x16xf32, #tpu.memory_space<vmem>>, vector<40x16xf32>
    %cst = arith.constant dense<0.000000e+00> : vector<40x64xf32>
    %8 = tpu.matmul %7, %0, %cst {dimension_numbers = #tpu.dot_dimension_numbers<[1], [0], [0], [1], [0, 0, 1, 1], [], []>} : vector<40x16xf32>, vector<16x64xf32>, vector<40x64xf32> -> vector<40x64xf32>
    %9 = vector.broadcast %3 : vector<1x64xf32> to vector<40x64xf32>
    %10 = arith.addf %8, %9 : vector<40x64xf32>
    %cst_10 = arith.constant 0.000000e+00 : f32
    %11 = vector.broadcast %cst_10 : f32 to vector<40x64xf32>
    %12 = arith.maximumf %10, %11 : vector<40x64xf32>
    %13 = vector.extract_strided_slice %12 {offsets = [0, 0], sizes = [4, 32], strides = [1, 1]} : vector<40x64xf32> to vector<4x32xf32>
    %14 = vector.extract_strided_slice %12 {offsets = [8, 32], sizes = [32, 32], strides = [1, 1]} : vector<40x64xf32> to vector<32x32xf32>
    %15 = tpu.iota {dimensions = array<i32: 1>} : vector<4x32xi32>
    %16 = tpu.iota {dimensions = array<i32: 0>} : vector<4x32xi32>
    %c8_i32 = arith.constant 8 : i32
    %17 = vector.broadcast %c8_i32 : i32 to vector<4x32xi32>
    %18 = arith.muli %16, %17 : vector<4x32xi32>
    %19 = arith.subi %15, %18 : vector<4x32xi32>
    %20 = arith.sitofp %19 : vector<4x32xi32> to vector<4x32xf32>
    %cst_11 = arith.constant 8.000000e+00 : f32
    %21 = vector.broadcast %cst_11 : f32 to vector<4x1xf32>
    %22 = arith.minimumf %6, %21 : vector<4x1xf32>
    %cst_12 = arith.constant 0.000000e+00 : f32
    %23 = vector.broadcast %cst_12 : f32 to vector<4x32xf32>
    %24 = arith.cmpf oge, %20, %23 : vector<4x32xf32>
    %25 = vector.broadcast %22 : vector<4x1xf32> to vector<4x32xf32>
    %26 = arith.cmpf olt, %20, %25 : vector<4x32xf32>
    %27 = arith.andi %24, %26 : vector<4x32xi1>
    %cst_13 = arith.constant 1.000000e+00 : f32
    %cst_14 = arith.constant 0.000000e+00 : f32
    %28 = vector.broadcast %cst_13 : f32 to vector<4x32xf32>
    %29 = vector.broadcast %cst_14 : f32 to vector<4x32xf32>
    %30 = arith.select %27, %28, %29 : vector<4x32xi1>, vector<4x32xf32>
    %cst_15 = arith.constant dense<0.000000e+00> : vector<4x32xf32>
    %31 = tpu.matmul %30, %14, %cst_15 {dimension_numbers = #tpu.dot_dimension_numbers<[1], [0], [0], [1], [0, 0, 1, 1], [], []>} : vector<4x32xf32>, vector<32x32xf32>, vector<4x32xf32> -> vector<4x32xf32>
    %cst_16 = arith.constant 1.000000e+00 : f32
    %32 = vector.broadcast %cst_16 : f32 to vector<4x1xf32>
    %33 = arith.maximumf %6, %32 : vector<4x1xf32>
    %34 = tpu.reciprocal %33 {approx = true} : vector<4x1xf32> -> vector<4x1xf32>
    %35 = vector.broadcast %34 : vector<4x1xf32> to vector<4x32xf32>
    %36 = arith.mulf %31, %35 : vector<4x32xf32>
    %37 = tpu.concatenate %13, %36 in 0 : vector<4x32xf32>, vector<4x32xf32> -> vector<8x32xf32>
    %cst_17 = arith.constant dense<0.000000e+00> : vector<8x64xf32>
    %38 = tpu.matmul %37, %1, %cst_17 {dimension_numbers = #tpu.dot_dimension_numbers<[1], [0], [0], [1], [0, 0, 1, 1], [], []>} : vector<8x32xf32>, vector<32x64xf32>, vector<8x64xf32> -> vector<8x64xf32>
    %39 = vector.extract_strided_slice %38 {offsets = [0, 0], sizes = [4, 32], strides = [1, 1]} : vector<8x64xf32> to vector<4x32xf32>
    %40 = vector.extract_strided_slice %4 {offsets = [0, 0], sizes = [1, 32], strides = [1, 1]} : vector<1x64xf32> to vector<1x32xf32>
    %41 = vector.broadcast %40 : vector<1x32xf32> to vector<4x32xf32>
    %42 = arith.addf %39, %41 : vector<4x32xf32>
    %cst_18 = arith.constant 1.000000e+00 : f32
    %43 = vector.broadcast %cst_18 : f32 to vector<4x1xf32>
    %44 = arith.minimumf %6, %43 : vector<4x1xf32>
    %45 = vector.extract_strided_slice %38 {offsets = [4, 32], sizes = [4, 32], strides = [1, 1]} : vector<8x64xf32> to vector<4x32xf32>
    %46 = vector.extract_strided_slice %4 {offsets = [0, 32], sizes = [1, 32], strides = [1, 1]} : vector<1x64xf32> to vector<1x32xf32>
    %47 = vector.broadcast %44 : vector<4x1xf32> to vector<4x32xf32>
    %48 = vector.broadcast %46 : vector<1x32xf32> to vector<4x32xf32>
    %49 = arith.mulf %47, %48 : vector<4x32xf32>
    %50 = arith.addf %45, %49 : vector<4x32xf32>
    %cst_19 = arith.constant dense<0.000000e+00> : vector<4x32xf32>
    %51 = tpu.matmul %50, %2, %cst_19 {dimension_numbers = #tpu.dot_dimension_numbers<[1], [0], [0], [1], [0, 0, 1, 1], [], []>} : vector<4x32xf32>, vector<32x32xf32>, vector<4x32xf32> -> vector<4x32xf32>
    %52 = vector.broadcast %5 : vector<1x32xf32> to vector<4x32xf32>
    %53 = arith.addf %51, %52 : vector<4x32xf32>
    %54 = math.tanh %53 : vector<4x32xf32>
    %cst_20 = arith.constant 0.000000e+00 : f32
    %55 = vector.broadcast %cst_20 : f32 to vector<4x64xf32>
    %56 = tpu.concatenate %42, %54, %55 in 1 : vector<4x32xf32>, vector<4x32xf32>, vector<4x64xf32> -> vector<4x128xf32>
    %c0_21 = arith.constant 0 : index
    %c0_22 = arith.constant 0 : index
    %57 = vector.load %arg2[%c0_21, %c0_22] : memref<4x128xf32, #tpu.memory_space<vmem>>, vector<4x128xf32>
    tpu.vector_store %arg2[%c0_21, %c0_22], %56 {strides = array<i32>} : memref<4x128xf32, #tpu.memory_space<vmem>>, vector<4x128xf32>,
    return
  }
}

</mosaic_0001>

<llo_original>
// kernel: user_agent_forward.1
$region0: #{user_agent_forward.1}
  #allocation0 [shape = 'u32[]', space=smem, size = 0x4, offset = 0x4, fixed_abs, tag = 'smem constant byte address 0x4 - core index']
  #allocation1 [shape = 'u32[144,128]{1,0:T(1,128)}', space=vmem, size = 0x12000, scoped, tag = 'internal scratch']
  %s0 = inlined_call_operand.vmem [shape: f32[40,16], index: 0, kind: input, shape index: {}]
  %s1 = inlined_call_operand.vmem [shape: f32[56,128], index: 1, kind: input, shape index: {}]
  %s2 = inlined_call_operand.vmem [shape: f32[4,128], index: 2, kind: output, shape index: {}]
  %s3 = sld [smem:[#allocation0]]
  $region18: #{user_agent_forward.1} parent=0
    _
  %s5 = ssub.s32 1, %s3
  %s6 = scalar_select 0, %s5, %s3
  // Predicated region
  $region2: #{user_agent_forward.1} parent=0 // pred_check
    _
  $region3: #{user_agent_forward.1} parent=0 // pred_check_branch
    %8 = sbr.rel (0) target = $region5
  $region4: #{user_agent_forward.1} parent=0 // pred_region
    _
  $region5: #{user_agent_forward.1} parent=0 // pred_fallthru
    _
  // Predicated region
  $region6: #{user_agent_forward.1} parent=0 // pred_check
    _
  $region7: #{user_agent_forward.1} parent=0 // pred_check_branch
    %10 = sbr.rel (0) target = $region9
  $region8: #{user_agent_forward.1} parent=0 // pred_region
    _
  $region9: #{user_agent_forward.1} parent=0 // pred_fallthru
    _
  %v11 = vld [vmem:[%s1] sm:$0xff]
  %v12 = vld [vmem:[%s1 + $0x8] sm:$0xff]
  %v13 = vld [vmem:[%s1 + $0x10] sm:$0xff]
  %v14 = vld [vmem:[%s1 + $0x18] sm:$0xff]
  %v15 = vld [vmem:[%s1 + $0x20] sm:$0xff]
  %v16 = vld [vmem:[%s1 + $0x28] sm:$0xff]
  %v17 = vld [vmem:[%s1 + $0x30] sm:$0x1]
  %v18 = vld [vmem:[%s1 + $0x31] sm:$0x1]
  %v19 = vld [vmem:[%s1 + $0x32] sm:$0xf]
  %v20 = vld [vmem:[%s0] sm:$0xff]
  %v21 = vld [vmem:[%s0 + $0x8] sm:$0xff]
  %v22 = vld [vmem:[%s0 + $0x10] sm:$0xff]
  %v23 = vld [vmem:[%s0 + $0x18] sm:$0xff]
  %v24 = vld [vmem:[%s0 + $0x20] sm:$0xff]
  %v25 = vlaneseq
  %v26 = vshrl.u32 %v25, 7
  %v27 = vsub.s32 0, %v26
  %v28 = vrot.slane %v17, %v27
  %vm29 = vcmask 130048
  %v31 = vsel %vm29, %v20, 0
  %v34 = vsel %vm29, %v21, 0
  %v37 = vsel %vm29, %v22, 0
  %v40 = vsel %vm29, %v23, 0
  %v43 = vsel %vm29, %v24, 0
  %45 = vmatprep.subr.mxu0 0.0
  %46 = vmatpush1.msra.mxu0 %v11
  %47 = vmatprep.subr.mxu0 0.0
  %48 = vmatpush1.msra.mxu0 %v12
  %49 = vmatprep.subr.mxu0 0.0
  %50 = vmatpush1.msra.mxu0 0.0
  %51 = vmatprep.subr.mxu0 0.0
  %52 = vmatpush1.msra.mxu0 0.0
  %53 = vmatprep.subr.mxu0 0.0
  %54 = vmatpush1.msra.mxu0 0.0
  %55 = vmatprep.subr.mxu0 0.0
  %56 = vmatpush1.msra.mxu0 0.0
  %57 = vmatprep.subr.mxu0 0.0
  %58 = vmatpush1.msra.mxu0 0.0
  %59 = vmatprep.subr.mxu0 0.0
  %60 = vmatpush1.msra.mxu0 0.0
  %61 = vmatprep.subr.mxu0 0.0
  %62 = vmatpush1.msra.mxu0 0.0
  %63 = vmatprep.subr.mxu0 0.0
  %64 = vmatpush1.msra.mxu0 0.0
  %65 = vmatprep.subr.mxu0 0.0
  %66 = vmatpush1.msra.mxu0 0.0
  %67 = vmatprep.subr.mxu0 0.0
  %68 = vmatpush1.msra.mxu0 0.0
  %69 = vmatprep.subr.mxu0 0.0
  %70 = vmatpush1.msra.mxu0 0.0
  %71 = vmatprep.subr.mxu0 0.0
  %72 = vmatpush1.msra.mxu0 0.0
  %73 = vmatprep.subr.mxu0 0.0
  %74 = vmatpush1.msra.mxu0 0.0
  %75 = vmatprep.subr.mxu0 0.0
  %76 = vmatpush1.msra.mxu0 0.0
  %77 = vmatprep.subr.mxu0 0.0
  %78 = vmatpush1.msra.mxu0 0.0
  %79 = vmatprep.subr.mxu0 0.0
  %80 = vmatpush1.msra.mxu0 0.0
  %81 = vmatprep.subr.mxu0 0.0
  %82 = vmatpush1.msra.mxu0 0.0
  %83 = vmatprep.subr.mxu0 0.0
  %84 = vmatpush1.msra.mxu0 0.0
  %85 = vmatprep.subr.mxu0 0.0
  %86 = vmatpush1.msra.mxu0 0.0
  %87 = vmatprep.subr.mxu0 0.0
  %88 = vmatpush1.msra.mxu0 0.0
  %89 = vmatprep.subr.mxu0 0.0
  %90 = vmatpush1.msra.mxu0 0.0
  %91 = vmatprep.subr.mxu0 0.0
  %92 = vmatpush1.msra.mxu0 0.0
  %93 = vmatprep.subr.mxu0 0.0
  %94 = vmatpush1.msra.mxu0 0.0
  %95 = vmatprep.subr.mxu0 0.0
  %96 = vmatpush1.msra.mxu0 0.0
  %97 = vmatprep.subr.mxu0 0.0
  %98 = vmatpush1.msra.mxu0 0.0
  %99 = vmatprep.subr.mxu0 0.0
  %100 = vmatpush1.msra.mxu0 0.0
  %101 = vmatprep.subr.mxu0 0.0
  %102 = vmatpush1.msra.mxu0 0.0
  %103 = vmatprep.subr.mxu0 0.0
  %104 = vmatpush1.msra.mxu0 0.0
  %105 = vmatprep.subr.mxu0 0.0
  %106 = vmatpush1.msra.mxu0 0.0
  %107 = vmatprep.subr.mxu0 0.0
  %108 = vmatpush1.msra.mxu0 0.0
  %109 = vmatprep.mubr.f32.mxu0 0.0
  %110 = vmatmul.mubr.f32.gmra.mrb[0].mxu0 %v31
  %v111 = vpop.f32.mrb[0].mxu0
  %v112 = vadd.f32 %v28, %v111
  %v113 = vpop.f32.mrb[0].mxu0
  %114 = vmatprep.mubr.f32.mxu0 0.0
  %115 = vmatmul.mubr.f32.gmra.mrb[0].mxu0 %v34
  %v116 = vpop.f32.mrb[0].mxu0
  %v117 = vadd.f32 %v28, %v116
  %v118 = vpop.f32.mrb[0].mxu0
  %119 = vmatprep.mubr.f32.mxu0 0.0
  %120 = vmatmul.mubr.f32.gmra.mrb[0].mxu0 %v37
  %v121 = vpop.f32.mrb[0].mxu0
  %v122 = vadd.f32 %v28, %v121
  %v123 = vpop.f32.mrb[0].mxu0
  %124 = vmatprep.mubr.f32.mxu0 0.0
  %125 = vmatmul.mubr.f32.gmra.mrb[0].mxu0 %v40
  %v126 = vpop.f32.mrb[0].mxu0
  %v127 = vadd.f32 %v28, %v126
  %v128 = vpop.f32.mrb[0].mxu0
  %129 = vmatprep.mubr.f32.mxu0 0.0
  %130 = vmatmul.mubr.f32.gmra.mrb[0].mxu0 %v43
  %v131 = vpop.f32.mrb[0].mxu0
  %v132 = vadd.f32 %v28, %v131
  %v133 = vpop.f32.mrb[0].mxu0
  %134 = vdwg.mxu0
  %v135 = vmax.f32 %v112, 0.0
  %v136 = vmax.f32 %v117, 0.0
  %v137 = vmax.f32 %v122, 0.0
  %v138 = vmax.f32 %v127, 0.0
  %v139 = vmax.f32 %v132, 0.0
  %v140 = vlaneseq
  %v141 = vand.u32 %v140, 127
  %v142 = vlaneseq
  %v143 = vshrl.u32 %v142, 7
  %v144 = vmul.u32 %v143, 8
  %v145 = vsub.s32 %v141, %v144
  %v146 = vcvt.s32.f32 %v145
  %v147 = vmin.f32 %v19, 8.0
  %vm148 = vcmp.ge.f32.partialorder %v146, 0.0
  %150 = vset.pattern.permute.xlu0 0
  %151 = vperm.xlu0 %150, %v147
  %v152 = vpop.permute.xlu0 %151
  %vm154 = vcmp.lt.f32.partialorder %v146, %v152
  %vm155 = vmand %vm148, %vm154
  %v156 = vsel %vm155, 1.0, 0.0
  %161 = vrot.lane.b32.xlu0 %v136, 96
  %v162 = vpop.permute.xlu0 %161
  %163 = vrot.lane.b32.xlu0 %v137, 96
  %v164 = vpop.permute.xlu0 %163
  %165 = vrot.lane.b32.xlu0 %v138, 96
  %v166 = vpop.permute.xlu0 %165
  %167 = vrot.lane.b32.xlu0 %v139, 96
  %v168 = vpop.permute.xlu0 %167
  %vm173 = vcmask 261120
  %v175 = vsel %vm173, %v156, 0
  %177 = vmatprep.subr.mxu0 0.0
  %178 = vmatpush1.msra.mxu0 %v162
  %179 = vmatprep.subr.mxu0 0.0
  %180 = vmatpush1.msra.mxu0 %v164
  %181 = vmatprep.subr.mxu0 0.0
  %182 = vmatpush1.msra.mxu0 %v166
  %183 = vmatprep.subr.mxu0 0.0
  %184 = vmatpush1.msra.mxu0 %v168
  %185 = vmatprep.subr.mxu0 0.0
  %186 = vmatpush1.msra.mxu0 0.0
  %187 = vmatprep.subr.mxu0 0.0
  %188 = vmatpush1.msra.mxu0 0.0
  %189 = vmatprep.subr.mxu0 0.0
  %190 = vmatpush1.msra.mxu0 0.0
  %191 = vmatprep.subr.mxu0 0.0
  %192 = vmatpush1.msra.mxu0 0.0
  %193 = vmatprep.subr.mxu0 0.0
  %194 = vmatpush1.msra.mxu0 0.0
  %195 = vmatprep.subr.mxu0 0.0
  %196 = vmatpush1.msra.mxu0 0.0
  %197 = vmatprep.subr.mxu0 0.0
  %198 = vmatpush1.msra.mxu0 0.0
  %199 = vmatprep.subr.mxu0 0.0
  %200 = vmatpush1.msra.mxu0 0.0
  %201 = vmatprep.subr.mxu0 0.0
  %202 = vmatpush1.msra.mxu0 0.0
  %203 = vmatprep.subr.mxu0 0.0
  %204 = vmatpush1.msra.mxu0 0.0
  %205 = vmatprep.subr.mxu0 0.0
  %206 = vmatpush1.msra.mxu0 0.0
  %207 = vmatprep.subr.mxu0 0.0
  %208 = vmatpush1.msra.mxu0 0.0
  %209 = vmatprep.subr.mxu0 0.0
  %210 = vmatpush1.msra.mxu0 0.0
  %211 = vmatprep.subr.mxu0 0.0
  %212 = vmatpush1.msra.mxu0 0.0
  %213 = vmatprep.subr.mxu0 0.0
  %214 = vmatpush1.msra.mxu0 0.0
  %215 = vmatprep.subr.mxu0 0.0
  %216 = vmatpush1.msra.mxu0 0.0
  %217 = vmatprep.subr.mxu0 0.0
  %218 = vmatpush1.msra.mxu0 0.0
  %219 = vmatprep.subr.mxu0 0.0
  %220 = vmatpush1.msra.mxu0 0.0
  %221 = vmatprep.subr.mxu0 0.0
  %222 = vmatpush1.msra.mxu0 0.0
  %223 = vmatprep.subr.mxu0 0.0
  %224 = vmatpush1.msra.mxu0 0.0
  %225 = vmatprep.subr.mxu0 0.0
  %226 = vmatpush1.msra.mxu0 0.0
  %227 = vmatprep.subr.mxu0 0.0
  %228 = vmatpush1.msra.mxu0 0.0
  %229 = vmatprep.subr.mxu0 0.0
  %230 = vmatpush1.msra.mxu0 0.0
  %231 = vmatprep.subr.mxu0 0.0
  %232 = vmatpush1.msra.mxu0 0.0
  %233 = vmatprep.subr.mxu0 0.0
  %234 = vmatpush1.msra.mxu0 0.0
  %235 = vmatprep.subr.mxu0 0.0
  %236 = vmatpush1.msra.mxu0 0.0
  %237 = vmatprep.subr.mxu0 0.0
  %238 = vmatpush1.msra.mxu0 0.0
  %239 = vmatprep.subr.mxu0 0.0
  %240 = vmatpush1.msra.mxu0 0.0
  %241 = vmatprep.mubr.f32.mxu0 0.0
  %242 = vmatmul.mubr.f32.gmra.mrb[0].mxu0 %v175
  %v243 = vpop.f32.mrb[0].mxu0
  %v244 = vadd.f32 0.0, %v243
  %v245 = vpop.f32.mrb[0].mxu0
  %246 = vdwg.mxu0
  %v247 = vmax.f32 %v19, 1.0
  %v248 = vrcp.pop %v247
  %250 = vset.pattern.permute.xlu0 0
  %251 = vperm.xlu0 %250, %v248
  %v252 = vpop.permute.xlu0 %251
  %v254 = vmul.f32 %v244, %v252
  %v256 = vrot.slane %v254, 4
  %vm258 = vcmask 1043456
  %v259 = vsel %vm258, %v135, %v256
  %v261 = vsel %vm173, %v259, 0
  %263 = vmatprep.subr.mxu0 0.0
  %264 = vmatpush1.msra.mxu0 %v13
  %265 = vmatprep.subr.mxu0 0.0
  %266 = vmatpush1.msra.mxu0 %v14
  %267 = vmatprep.subr.mxu0 0.0
  %268 = vmatpush1.msra.mxu0 %v15
  %269 = vmatprep.subr.mxu0 0.0
  %270 = vmatpush1.msra.mxu0 %v16
  %271 = vmatprep.subr.mxu0 0.0
  %272 = vmatpush1.msra.mxu0 0.0
  %273 = vmatprep.subr.mxu0 0.0
  %274 = vmatpush1.msra.mxu0 0.0
  %275 = vmatprep.subr.mxu0 0.0
  %276 = vmatpush1.msra.mxu0 0.0
  %277 = vmatprep.subr.mxu0 0.0
  %278 = vmatpush1.msra.mxu0 0.0
  %279 = vmatprep.subr.mxu0 0.0
  %280 = vmatpush1.msra.mxu0 0.0
  %281 = vmatprep.subr.mxu0 0.0
  %282 = vmatpush1.msra.mxu0 0.0
  %283 = vmatprep.subr.mxu0 0.0
  %284 = vmatpush1.msra.mxu0 0.0
  %285 = vmatprep.subr.mxu0 0.0
  %286 = vmatpush1.msra.mxu0 0.0
  %287 = vmatprep.subr.mxu0 0.0
  %288 = vmatpush1.msra.mxu0 0.0
  %289 = vmatprep.subr.mxu0 0.0
  %290 = vmatpush1.msra.mxu0 0.0
  %291 = vmatprep.subr.mxu0 0.0
  %292 = vmatpush1.msra.mxu0 0.0
  %293 = vmatprep.subr.mxu0 0.0
  %294 = vmatpush1.msra.mxu0 0.0
  %295 = vmatprep.subr.mxu0 0.0
  %296 = vmatpush1.msra.mxu0 0.0
  %297 = vmatprep.subr.mxu0 0.0
  %298 = vmatpush1.msra.mxu0 0.0
  %299 = vmatprep.subr.mxu0 0.0
  %300 = vmatpush1.msra.mxu0 0.0
  %301 = vmatprep.subr.mxu0 0.0
  %302 = vmatpush1.msra.mxu0 0.0
  %303 = vmatprep.subr.mxu0 0.0
  %304 = vmatpush1.msra.mxu0 0.0
  %305 = vmatprep.subr.mxu0 0.0
  %306 = vmatpush1.msra.mxu0 0.0
  %307 = vmatprep.subr.mxu0 0.0
  %308 = vmatpush1.msra.mxu0 0.0
  %309 = vmatprep.subr.mxu0 0.0
  %310 = vmatpush1.msra.mxu0 0.0
  %311 = vmatprep.subr.mxu0 0.0
  %312 = vmatpush1.msra.mxu0 0.0
  %313 = vmatprep.subr.mxu0 0.0
  %314 = vmatpush1.msra.mxu0 0.0
  %315 = vmatprep.subr.mxu0 0.0
  %316 = vmatpush1.msra.mxu0 0.0
  %317 = vmatprep.subr.mxu0 0.0
  %318 = vmatpush1.msra.mxu0 0.0
  %319 = vmatprep.subr.mxu0 0.0
  %320 = vmatpush1.msra.mxu0 0.0
  %321 = vmatprep.subr.mxu0 0.0
  %322 = vmatpush1.msra.mxu0 0.0
  %323 = vmatprep.subr.mxu0 0.0
  %324 = vmatpush1.msra.mxu0 0.0
  %325 = vmatprep.subr.mxu0 0.0
  %326 = vmatpush1.msra.mxu0 0.0
  %327 = vmatprep.mubr.f32.mxu0 0.0
  %328 = vmatmul.mubr.f32.gmra.mrb[0].mxu0 %v261
  %v329 = vpop.f32.mrb[0].mxu0
  %v330 = vadd.f32 0.0, %v329
  %v331 = vpop.f32.mrb[0].mxu0
  %332 = vdwg.mxu0
  %v333 = vlaneseq
  %v334 = vshrl.u32 %v333, 7
  %v335 = vsub.s32 0, %v334
  %v336 = vrot.slane %v18, %v335
  %v337 = vadd.f32 %v330, %v336
  %v338 = vmin.f32 %v19, 1.0
  %340 = vset.pattern.permute.xlu0 0
  %341 = vperm.xlu0 %340, %v338
  %v342 = vpop.permute.xlu0 %341
  %v344 = vmul.f32 %v342, %v336
  %v346 = vrot.slane %v344, 4
  %v348 = vadd.f32 %v330, %v346
  %v350 = vrot.slane %v348, 4
  %351 = vrot.lane.b32.xlu0 %v350, 96
  %v352 = vpop.permute.xlu0 %351
  %357 = vrot.lane.b32.xlu0 %v13, 64
  %v358 = vpop.permute.xlu0 %357
  %359 = vrot.lane.b32.xlu0 %v14, 64
  %v360 = vpop.permute.xlu0 %359
  %361 = vrot.lane.b32.xlu0 %v15, 64
  %v362 = vpop.permute.xlu0 %361
  %363 = vrot.lane.b32.xlu0 %v16, 64
  %v364 = vpop.permute.xlu0 %363
  %370 = vrot.lane.b32.xlu0 %v336, 64
  %v371 = vpop.permute.xlu0 %370
  %v373 = vsel %vm173, %v352, 0
  %375 = vmatprep.subr.mxu0 0.0
  %376 = vmatpush1.msra.mxu0 %v358
  %377 = vmatprep.subr.mxu0 0.0
  %378 = vmatpush1.msra.mxu0 %v360
  %379 = vmatprep.subr.mxu0 0.0
  %380 = vmatpush1.msra.mxu0 %v362
  %381 = vmatprep.subr.mxu0 0.0
  %382 = vmatpush1.msra.mxu0 %v364
  %383 = vmatprep.subr.mxu0 0.0
  %384 = vmatpush1.msra.mxu0 0.0
  %385 = vmatprep.subr.mxu0 0.0
  %386 = vmatpush1.msra.mxu0 0.0
  %387 = vmatprep.subr.mxu0 0.0
  %388 = vmatpush1.msra.mxu0 0.0
  %389 = vmatprep.subr.mxu0 0.0
  %390 = vmatpush1.msra.mxu0 0.0
  %391 = vmatprep.subr.mxu0 0.0
  %392 = vmatpush1.msra.mxu0 0.0
  %393 = vmatprep.subr.mxu0 0.0
  %394 = vmatpush1.msra.mxu0 0.0
  %395 = vmatprep.subr.mxu0 0.0
  %396 = vmatpush1.msra.mxu0 0.0
  %397 = vmatprep.subr.mxu0 0.0
  %398 = vmatpush1.msra.mxu0 0.0
  %399 = vmatprep.subr.mxu0 0.0
  %400 = vmatpush1.msra.mxu0 0.0
  %401 = vmatprep.subr.mxu0 0.0
  %402 = vmatpush1.msra.mxu0 0.0
  %403 = vmatprep.subr.mxu0 0.0
  %404 = vmatpush1.msra.mxu0 0.0
  %405 = vmatprep.subr.mxu0 0.0
  %406 = vmatpush1.msra.mxu0 0.0
  %407 = vmatprep.subr.mxu0 0.0
  %408 = vmatpush1.msra.mxu0 0.0
  %409 = vmatprep.subr.mxu0 0.0
  %410 = vmatpush1.msra.mxu0 0.0
  %411 = vmatprep.subr.mxu0 0.0
  %412 = vmatpush1.msra.mxu0 0.0
  %413 = vmatprep.subr.mxu0 0.0
  %414 = vmatpush1.msra.mxu0 0.0
  %415 = vmatprep.subr.mxu0 0.0
  %416 = vmatpush1.msra.mxu0 0.0
  %417 = vmatprep.subr.mxu0 0.0
  %418 = vmatpush1.msra.mxu0 0.0
  %419 = vmatprep.subr.mxu0 0.0
  %420 = vmatpush1.msra.mxu0 0.0
  %421 = vmatprep.subr.mxu0 0.0
  %422 = vmatpush1.msra.mxu0 0.0
  %423 = vmatprep.subr.mxu0 0.0
  %424 = vmatpush1.msra.mxu0 0.0
  %425 = vmatprep.subr.mxu0 0.0
  %426 = vmatpush1.msra.mxu0 0.0
  %427 = vmatprep.subr.mxu0 0.0
  %428 = vmatpush1.msra.mxu0 0.0
  %429 = vmatprep.subr.mxu0 0.0
  %430 = vmatpush1.msra.mxu0 0.0
  %431 = vmatprep.subr.mxu0 0.0
  %432 = vmatpush1.msra.mxu0 0.0
  %433 = vmatprep.subr.mxu0 0.0
  %434 = vmatpush1.msra.mxu0 0.0
  %435 = vmatprep.subr.mxu0 0.0
  %436 = vmatpush1.msra.mxu0 0.0
  %437 = vmatprep.subr.mxu0 0.0
  %438 = vmatpush1.msra.mxu0 0.0
  %439 = vmatprep.mubr.f32.mxu0 0.0
  %440 = vmatmul.mubr.f32.gmra.mrb[0].mxu0 %v373
  %v441 = vpop.f32.mrb[0].mxu0
  %v442 = vadd.f32 %v371, %v441
  %v443 = vpop.f32.mrb[0].mxu0
  %444 = vdwg.mxu0
  %v445 = vtanh.pop %v442
  %447 = vrot.lane.b32.xlu0 %v445, 32
  %v448 = vpop.permute.xlu0 %447
  %v450 = vsel %vm173, %v337, %v448
  %vm451 = vcmask 523264
  %v452 = vsel %vm451, %v450, 0.0
  %453 = vst [vmem:[%s2] sm:$0xf] %v452
  // Predicated region
  $region10: #{user_agent_forward.1} parent=0 // pred_check
    _
  $region11: #{user_agent_forward.1} parent=0 // pred_check_branch
    %455 = sbr.rel (0) target = $region13
  $region12: #{user_agent_forward.1} parent=0 // pred_region
    _
  $region13: #{user_agent_forward.1} parent=0 // pred_fallthru
    _
  // Predicated region
  $region14: #{user_agent_forward.1} parent=0 // pred_check
    _
  $region15: #{user_agent_forward.1} parent=0 // pred_check_branch
    %457 = sbr.rel (0) target = $region17
  $region16: #{user_agent_forward.1} parent=0 // pred_region
    _
  $region17: #{user_agent_forward.1} parent=0 // pred_fallthru
    _

</llo_original>
